<compile_context>
chip_gen: v6e
topology: v6e:2x2x1
jax: 0.10.0
libtpu: 0.0.40
codegen_flags: <defaults>
</compile_context>

<pallas_src>
import numpy as np
import jax
import jax.numpy as jnp
from jax import lax
from jax.experimental import pallas as pl
from jax.experimental.pallas import tpu as pltpu

# Static problem sizes (from the PyTorch module / its example input).
N, C, H, W = 1, 8, 42, 54
KW = 6                     # conv_0 kernel width (kernel height = 1)
W1 = W - KW + 1            # 49 : width after conv_0 (VALID)
PK = 5                     # avg-pool kernel / stride along width
WP = (W1 - PK) // PK + 1   # 9  : width after pooling (floor mode, drop remainder)

# Unscaled pooling selection matrix (compile-time numpy constant).
# P[w, j] = 1 if PK*j <= w < PK*j + PK else 0 (trailing conv columns 45..48 dropped).
_POOL_BASE_NP = np.zeros((W1, WP), dtype=np.float32)
for _j in range(WP):
    _POOL_BASE_NP[PK * _j:PK * _j + PK, _j] = 1.0


def model_tanh_kernel(x_ref, w0_ref, pmat_ref, o_ref):
    """x_ref:(1,C,H,W) VMEM, w0_ref:(C*KW,) SMEM,
    pmat_ref:(W1,WP) VMEM (carries 1/PK and the conv_1 scalar), o_ref:(H,WP) VMEM."""
    # Hoist the per-channel (H, W) slabs once; reuse across all KW kernel taps.
    xs = [x_ref[0, c] for c in range(C)]

    # conv_0 (1x6, VALID, no bias): for each tap, sum over channels at full width,
    # then apply a single lane-offset slice (6 slices total instead of 48).
    # Three independent partial accumulators break the serial add chain.
    accs = [jnp.zeros((H, W1), jnp.float32) for _ in range(3)]
    for kw in range(KW):
        y = xs[0] * w0_ref[kw]
        for c in range(1, C):
            y = y + xs[c] * w0_ref[c * KW + kw]
        accs[kw % 3] = accs[kw % 3] + y[:, kw:kw + W1]
    acc = (accs[0] + accs[1]) + accs[2]

    # tanh_0 (EUP), then avg_pool_0 + conv_1 fused into one MXU matmul
    # (pooling matrix already scaled by w1 / PK), then tanh_1 (EUP).
    t = jnp.tanh(acc)
    pooled = jnp.dot(t, pmat_ref[...], preferred_element_type=jnp.float32)
    o_ref[...] = jnp.tanh(pooled)


@jax.jit
def model_tanh_forward(x, w_conv0, w_conv1):
    """x: (1, 8, 42, 54) float32 NCHW; returns (1, 1, 42, 9) float32."""
    # conv_0 weights flattened to 1D for SMEM (index c*KW + kw).
    w0 = w_conv0.reshape(C * KW).astype(jnp.float32)
    # Fold avg-pool 1/PK and the conv_1 1x1 scalar into the pooling matrix:
    # (t @ P) * (w1/PK) == t @ (P * w1/PK).
    w1_scalar = w_conv1.reshape(()).astype(jnp.float32)
    pmat = jnp.asarray(_POOL_BASE_NP) * (w1_scalar / PK)

    out = pl.pallas_call(
        model_tanh_kernel,
        out_shape=jax.ShapeDtypeStruct((H, WP), jnp.float32),
        in_specs=[
            pl.BlockSpec(memory_space=pltpu.MemorySpace.VMEM),   # x (1,C,H,W), un-sliced
            pl.BlockSpec(memory_space=pltpu.MemorySpace.SMEM),   # conv_0 weights (C*KW,)
            pl.BlockSpec(memory_space=pltpu.MemorySpace.VMEM),   # folded pool/conv_1 matrix
        ],
        out_specs=pl.BlockSpec(memory_space=pltpu.MemorySpace.VMEM),
    )(x, w0, pmat)

    # TODO(synk): if batch > 1 ever matters, add a leading grid axis over batch marked
    # "parallel" (megacore on v7x) and make the output lane-dense across batch.
    return out.reshape(1, 1, H, WP)


def _reference(x, w_conv0, w_conv1):
    dn = ("NCHW", "OIHW", "NCHW")
    y1 = lax.conv_general_dilated(x, w_conv0, (1, 1), "VALID", dimension_numbers=dn)
    y2 = jnp.tanh(y1)
    y3 = y2[..., : WP * PK].reshape(1, 1, H, WP, PK).mean(axis=-1)
    y4 = lax.conv_general_dilated(y3, w_conv1, (1, 1), "VALID", dimension_numbers=dn)
    return jnp.tanh(y4)


if __name__ == "__main__":
    key = jax.random.PRNGKey(0)
    kx, kw0, kw1 = jax.random.split(key, 3)
    x0 = jax.random.normal(kx, (N, C, H, W), dtype=jnp.float32)
    # Deterministic parameter init (Conv2d weight shapes from the module's __init__, bias=False).
    w_conv0 = jax.random.normal(kw0, (1, C, 1, KW), dtype=jnp.float32) * 0.1
    w_conv1 = jax.random.normal(kw1, (1, 1, 1, 1), dtype=jnp.float32) * 0.5

    y = model_tanh_forward(x0, w_conv0, w_conv1)
    jax.block_until_ready(y)
    assert y.shape == (1, 1, H, WP)

    ref = _reference(x0, w_conv0, w_conv1)
    assert jnp.allclose(y, ref, atol=1e-5, rtol=1e-5), "mismatch vs JAX reference"

    print("KERNEL_OK")
</pallas_src>

<mosaic_0001>
module attributes {stable_mosaic.version = 11 : i64} {
  func.func @model_tanh_kernel(%arg0: memref<1x8x42x54xf32, #tpu.memory_space<vmem>>, %arg1: memref<48xf32, #tpu.memory_space<smem>>, %arg2: memref<49x9xf32, #tpu.memory_space<vmem>>, %arg3: memref<42x9xf32, #tpu.memory_space<vmem>>) attributes {dimension_semantics = [], scalar_prefetch = 0 : i64, scratch_operands = 0 : i64, tpu.core_type = #tpu.core_type<tc>} {
    %c0 = arith.constant 0 : index
    %c0_0 = arith.constant 0 : index
    %c0_1 = arith.constant 0 : index
    %c0_2 = arith.constant 0 : index
    %0 = vector.load %arg0[%c0, %c0_0, %c0_1, %c0_2] : memref<1x8x42x54xf32, #tpu.memory_space<vmem>>, vector<1x1x42x54xf32>
    %1 = vector.shape_cast %0 : vector<1x1x42x54xf32> to vector<42x54xf32>
    %c0_3 = arith.constant 0 : index
    %c1 = arith.constant 1 : index
    %c0_4 = arith.constant 0 : index
    %c0_5 = arith.constant 0 : index
    %2 = vector.load %arg0[%c0_3, %c1, %c0_4, %c0_5] : memref<1x8x42x54xf32, #tpu.memory_space<vmem>>, vector<1x1x42x54xf32>
    %3 = vector.shape_cast %2 : vector<1x1x42x54xf32> to vector<42x54xf32>
    %c0_6 = arith.constant 0 : index
    %c2 = arith.constant 2 : index
    %c0_7 = arith.constant 0 : index
    %c0_8 = arith.constant 0 : index
    %4 = vector.load %arg0[%c0_6, %c2, %c0_7, %c0_8] : memref<1x8x42x54xf32, #tpu.memory_space<vmem>>, vector<1x1x42x54xf32>
    %5 = vector.shape_cast %4 : vector<1x1x42x54xf32> to vector<42x54xf32>
    %c0_9 = arith.constant 0 : index
    %c3 = arith.constant 3 : index
    %c0_10 = arith.constant 0 : index
    %c0_11 = arith.constant 0 : index
    %6 = vector.load %arg0[%c0_9, %c3, %c0_10, %c0_11] : memref<1x8x42x54xf32, #tpu.memory_space<vmem>>, vector<1x1x42x54xf32>
    %7 = vector.shape_cast %6 : vector<1x1x42x54xf32> to vector<42x54xf32>
    %c0_12 = arith.constant 0 : index
    %c4 = arith.constant 4 : index
    %c0_13 = arith.constant 0 : index
    %c0_14 = arith.constant 0 : index
    %8 = vector.load %arg0[%c0_12, %c4, %c0_13, %c0_14] : memref<1x8x42x54xf32, #tpu.memory_space<vmem>>, vector<1x1x42x54xf32>
    %9 = vector.shape_cast %8 : vector<1x1x42x54xf32> to vector<42x54xf32>
    %c0_15 = arith.constant 0 : index
    %c5 = arith.constant 5 : index
    %c0_16 = arith.constant 0 : index
    %c0_17 = arith.constant 0 : index
    %10 = vector.load %arg0[%c0_15, %c5, %c0_16, %c0_17] : memref<1x8x42x54xf32, #tpu.memory_space<vmem>>, vector<1x1x42x54xf32>
    %11 = vector.shape_cast %10 : vector<1x1x42x54xf32> to vector<42x54xf32>
    %c0_18 = arith.constant 0 : index
    %c6 = arith.constant 6 : index
    %c0_19 = arith.constant 0 : index
    %c0_20 = arith.constant 0 : index
    %12 = vector.load %arg0[%c0_18, %c6, %c0_19, %c0_20] : memref<1x8x42x54xf32, #tpu.memory_space<vmem>>, vector<1x1x42x54xf32>
    %13 = vector.shape_cast %12 : vector<1x1x42x54xf32> to vector<42x54xf32>
    %c0_21 = arith.constant 0 : index
    %c7 = arith.constant 7 : index
    %c0_22 = arith.constant 0 : index
    %c0_23 = arith.constant 0 : index
    %14 = vector.load %arg0[%c0_21, %c7, %c0_22, %c0_23] : memref<1x8x42x54xf32, #tpu.memory_space<vmem>>, vector<1x1x42x54xf32>
    %15 = vector.shape_cast %14 : vector<1x1x42x54xf32> to vector<42x54xf32>
    %cst = arith.constant 0.000000e+00 : f32
    %16 = vector.broadcast %cst : f32 to vector<42x49xf32>
    %cst_24 = arith.constant 0.000000e+00 : f32
    %17 = vector.broadcast %cst_24 : f32 to vector<42x49xf32>
    %cst_25 = arith.constant 0.000000e+00 : f32
    %18 = vector.broadcast %cst_25 : f32 to vector<42x49xf32>
    %c0_26 = arith.constant 0 : index
    %19 = memref.load %arg1[%c0_26] : memref<48xf32, #tpu.memory_space<smem>>
    %20 = vector.broadcast %19 : f32 to vector<42x54xf32>
    %21 = arith.mulf %1, %20 : vector<42x54xf32>
    %c6_27 = arith.constant 6 : index
    %22 = memref.load %arg1[%c6_27] : memref<48xf32, #tpu.memory_space<smem>>
    %23 = vector.broadcast %22 : f32 to vector<42x54xf32>
    %24 = arith.mulf %3, %23 : vector<42x54xf32>
    %25 = arith.addf %21, %24 : vector<42x54xf32>
    %c12 = arith.constant 12 : index
    %26 = memref.load %arg1[%c12] : memref<48xf32, #tpu.memory_space<smem>>
    %27 = vector.broadcast %26 : f32 to vector<42x54xf32>
    %28 = arith.mulf %5, %27 : vector<42x54xf32>
    %29 = arith.addf %25, %28 : vector<42x54xf32>
    %c18 = arith.constant 18 : index
    %30 = memref.load %arg1[%c18] : memref<48xf32, #tpu.memory_space<smem>>
    %31 = vector.broadcast %30 : f32 to vector<42x54xf32>
    %32 = arith.mulf %7, %31 : vector<42x54xf32>
    %33 = arith.addf %29, %32 : vector<42x54xf32>
    %c24 = arith.constant 24 : index
    %34 = memref.load %arg1[%c24] : memref<48xf32, #tpu.memory_space<smem>>
    %35 = vector.broadcast %34 : f32 to vector<42x54xf32>
    %36 = arith.mulf %9, %35 : vector<42x54xf32>
    %37 = arith.addf %33, %36 : vector<42x54xf32>
    %c30 = arith.constant 30 : index
    %38 = memref.load %arg1[%c30] : memref<48xf32, #tpu.memory_space<smem>>
    %39 = vector.broadcast %38 : f32 to vector<42x54xf32>
    %40 = arith.mulf %11, %39 : vector<42x54xf32>
    %41 = arith.addf %37, %40 : vector<42x54xf32>
    %c36 = arith.constant 36 : index
    %42 = memref.load %arg1[%c36] : memref<48xf32, #tpu.memory_space<smem>>
    %43 = vector.broadcast %42 : f32 to vector<42x54xf32>
    %44 = arith.mulf %13, %43 : vector<42x54xf32>
    %45 = arith.addf %41, %44 : vector<42x54xf32>
    %c42 = arith.constant 42 : index
    %46 = memref.load %arg1[%c42] : memref<48xf32, #tpu.memory_space<smem>>
    %47 = vector.broadcast %46 : f32 to vector<42x54xf32>
    %48 = arith.mulf %15, %47 : vector<42x54xf32>
    %49 = arith.addf %45, %48 : vector<42x54xf32>
    %50 = vector.extract_strided_slice %49 {offsets = [0, 0], sizes = [42, 49], strides = [1, 1]} : vector<42x54xf32> to vector<42x49xf32>
    %51 = arith.addf %16, %50 : vector<42x49xf32>
    %c1_28 = arith.constant 1 : index
    %52 = memref.load %arg1[%c1_28] : memref<48xf32, #tpu.memory_space<smem>>
    %53 = vector.broadcast %52 : f32 to vector<42x54xf32>
    %54 = arith.mulf %1, %53 : vector<42x54xf32>
    %c7_29 = arith.constant 7 : index
    %55 = memref.load %arg1[%c7_29] : memref<48xf32, #tpu.memory_space<smem>>
    %56 = vector.broadcast %55 : f32 to vector<42x54xf32>
    %57 = arith.mulf %3, %56 : vector<42x54xf32>
    %58 = arith.addf %54, %57 : vector<42x54xf32>
    %c13 = arith.constant 13 : index
    %59 = memref.load %arg1[%c13] : memref<48xf32, #tpu.memory_space<smem>>
    %60 = vector.broadcast %59 : f32 to vector<42x54xf32>
    %61 = arith.mulf %5, %60 : vector<42x54xf32>
    %62 = arith.addf %58, %61 : vector<42x54xf32>
    %c19 = arith.constant 19 : index
    %63 = memref.load %arg1[%c19] : memref<48xf32, #tpu.memory_space<smem>>
    %64 = vector.broadcast %63 : f32 to vector<42x54xf32>
    %65 = arith.mulf %7, %64 : vector<42x54xf32>
    %66 = arith.addf %62, %65 : vector<42x54xf32>
    %c25 = arith.constant 25 : index
    %67 = memref.load %arg1[%c25] : memref<48xf32, #tpu.memory_space<smem>>
    %68 = vector.broadcast %67 : f32 to vector<42x54xf32>
    %69 = arith.mulf %9, %68 : vector<42x54xf32>
    %70 = arith.addf %66, %69 : vector<42x54xf32>
    %c31 = arith.constant 31 : index
    %71 = memref.load %arg1[%c31] : memref<48xf32, #tpu.memory_space<smem>>
    %72 = vector.broadcast %71 : f32 to vector<42x54xf32>
    %73 = arith.mulf %11, %72 : vector<42x54xf32>
    %74 = arith.addf %70, %73 : vector<42x54xf32>
    %c37 = arith.constant 37 : index
    %75 = memref.load %arg1[%c37] : memref<48xf32, #tpu.memory_space<smem>>
    %76 = vector.broadcast %75 : f32 to vector<42x54xf32>
    %77 = arith.mulf %13, %76 : vector<42x54xf32>
    %78 = arith.addf %74, %77 : vector<42x54xf32>
    %c43 = arith.constant 43 : index
    %79 = memref.load %arg1[%c43] : memref<48xf32, #tpu.memory_space<smem>>
    %80 = vector.broadcast %79 : f32 to vector<42x54xf32>
    %81 = arith.mulf %15, %80 : vector<42x54xf32>
    %82 = arith.addf %78, %81 : vector<42x54xf32>
    %83 = vector.extract_strided_slice %82 {offsets = [0, 1], sizes = [42, 49], strides = [1, 1]} : vector<42x54xf32> to vector<42x49xf32>
    %84 = arith.addf %17, %83 : vector<42x49xf32>
    %c2_30 = arith.constant 2 : index
    %85 = memref.load %arg1[%c2_30] : memref<48xf32, #tpu.memory_space<smem>>
    %86 = vector.broadcast %85 : f32 to vector<42x54xf32>
    %87 = arith.mulf %1, %86 : vector<42x54xf32>
    %c8 = arith.constant 8 : index
    %88 = memref.load %arg1[%c8] : memref<48xf32, #tpu.memory_space<smem>>
    %89 = vector.broadcast %88 : f32 to vector<42x54xf32>
    %90 = arith.mulf %3, %89 : vector<42x54xf32>
    %91 = arith.addf %87, %90 : vector<42x54xf32>
    %c14 = arith.constant 14 : index
    %92 = memref.load %arg1[%c14] : memref<48xf32, #tpu.memory_space<smem>>
    %93 = vector.broadcast %92 : f32 to vector<42x54xf32>
    %94 = arith.mulf %5, %93 : vector<42x54xf32>
    %95 = arith.addf %91, %94 : vector<42x54xf32>
    %c20 = arith.constant 20 : index
    %96 = memref.load %arg1[%c20] : memref<48xf32, #tpu.memory_space<smem>>
    %97 = vector.broadcast %96 : f32 to vector<42x54xf32>
    %98 = arith.mulf %7, %97 : vector<42x54xf32>
    %99 = arith.addf %95, %98 : vector<42x54xf32>
    %c26 = arith.constant 26 : index
    %100 = memref.load %arg1[%c26] : memref<48xf32, #tpu.memory_space<smem>>
    %101 = vector.broadcast %100 : f32 to vector<42x54xf32>
    %102 = arith.mulf %9, %101 : vector<42x54xf32>
    %103 = arith.addf %99, %102 : vector<42x54xf32>
    %c32 = arith.constant 32 : index
    %104 = memref.load %arg1[%c32] : memref<48xf32, #tpu.memory_space<smem>>
    %105 = vector.broadcast %104 : f32 to vector<42x54xf32>
    %106 = arith.mulf %11, %105 : vector<42x54xf32>
    %107 = arith.addf %103, %106 : vector<42x54xf32>
    %c38 = arith.constant 38 : index
    %108 = memref.load %arg1[%c38] : memref<48xf32, #tpu.memory_space<smem>>
    %109 = vector.broadcast %108 : f32 to vector<42x54xf32>
    %110 = arith.mulf %13, %109 : vector<42x54xf32>
    %111 = arith.addf %107, %110 : vector<42x54xf32>
    %c44 = arith.constant 44 : index
    %112 = memref.load %arg1[%c44] : memref<48xf32, #tpu.memory_space<smem>>
    %113 = vector.broadcast %112 : f32 to vector<42x54xf32>
    %114 = arith.mulf %15, %113 : vector<42x54xf32>
    %115 = arith.addf %111, %114 : vector<42x54xf32>
    %116 = vector.extract_strided_slice %115 {offsets = [0, 2], sizes = [42, 49], strides = [1, 1]} : vector<42x54xf32> to vector<42x49xf32>
    %117 = arith.addf %18, %116 : vector<42x49xf32>
    %c3_31 = arith.constant 3 : index
    %118 = memref.load %arg1[%c3_31] : memref<48xf32, #tpu.memory_space<smem>>
    %119 = vector.broadcast %118 : f32 to vector<42x54xf32>
    %120 = arith.mulf %1, %119 : vector<42x54xf32>
    %c9 = arith.constant 9 : index
    %121 = memref.load %arg1[%c9] : memref<48xf32, #tpu.memory_space<smem>>
    %122 = vector.broadcast %121 : f32 to vector<42x54xf32>
    %123 = arith.mulf %3, %122 : vector<42x54xf32>
    %124 = arith.addf %120, %123 : vector<42x54xf32>
    %c15 = arith.constant 15 : index
    %125 = memref.load %arg1[%c15] : memref<48xf32, #tpu.memory_space<smem>>
    %126 = vector.broadcast %125 : f32 to vector<42x54xf32>
    %127 = arith.mulf %5, %126 : vector<42x54xf32>
    %128 = arith.addf %124, %127 : vector<42x54xf32>
    %c21 = arith.constant 21 : index
    %129 = memref.load %arg1[%c21] : memref<48xf32, #tpu.memory_space<smem>>
    %130 = vector.broadcast %129 : f32 to vector<42x54xf32>
    %131 = arith.mulf %7, %130 : vector<42x54xf32>
    %132 = arith.addf %128, %131 : vector<42x54xf32>
    %c27 = arith.constant 27 : index
    %133 = memref.load %arg1[%c27] : memref<48xf32, #tpu.memory_space<smem>>
    %134 = vector.broadcast %133 : f32 to vector<42x54xf32>
    %135 = arith.mulf %9, %134 : vector<42x54xf32>
    %136 = arith.addf %132, %135 : vector<42x54xf32>
    %c33 = arith.constant 33 : index
    %137 = memref.load %arg1[%c33] : memref<48xf32, #tpu.memory_space<smem>>
    %138 = vector.broadcast %137 : f32 to vector<42x54xf32>
    %139 = arith.mulf %11, %138 : vector<42x54xf32>
    %140 = arith.addf %136, %139 : vector<42x54xf32>
    %c39 = arith.constant 39 : index
    %141 = memref.load %arg1[%c39] : memref<48xf32, #tpu.memory_space<smem>>
    %142 = vector.broadcast %141 : f32 to vector<42x54xf32>
    %143 = arith.mulf %13, %142 : vector<42x54xf32>
    %144 = arith.addf %140, %143 : vector<42x54xf32>
    %c45 = arith.constant 45 : index
    %145 = memref.load %arg1[%c45] : memref<48xf32, #tpu.memory_space<smem>>
    %146 = vector.broadcast %145 : f32 to vector<42x54xf32>
    %147 = arith.mulf %15, %146 : vector<42x54xf32>
    %148 = arith.addf %144, %147 : vector<42x54xf32>
    %149 = vector.extract_strided_slice %148 {offsets = [0, 3], sizes = [42, 49], strides = [1, 1]} : vector<42x54xf32> to vector<42x49xf32>
    %150 = arith.addf %51, %149 : vector<42x49xf32>
    %c4_32 = arith.constant 4 : index
    %151 = memref.load %arg1[%c4_32] : memref<48xf32, #tpu.memory_space<smem>>
    %152 = vector.broadcast %151 : f32 to vector<42x54xf32>
    %153 = arith.mulf %1, %152 : vector<42x54xf32>
    %c10 = arith.constant 10 : index
    %154 = memref.load %arg1[%c10] : memref<48xf32, #tpu.memory_space<smem>>
    %155 = vector.broadcast %154 : f32 to vector<42x54xf32>
    %156 = arith.mulf %3, %155 : vector<42x54xf32>
    %157 = arith.addf %153, %156 : vector<42x54xf32>
    %c16 = arith.constant 16 : index
    %158 = memref.load %arg1[%c16] : memref<48xf32, #tpu.memory_space<smem>>
    %159 = vector.broadcast %158 : f32 to vector<42x54xf32>
    %160 = arith.mulf %5, %159 : vector<42x54xf32>
    %161 = arith.addf %157, %160 : vector<42x54xf32>
    %c22 = arith.constant 22 : index
    %162 = memref.load %arg1[%c22] : memref<48xf32, #tpu.memory_space<smem>>
    %163 = vector.broadcast %162 : f32 to vector<42x54xf32>
    %164 = arith.mulf %7, %163 : vector<42x54xf32>
    %165 = arith.addf %161, %164 : vector<42x54xf32>
    %c28 = arith.constant 28 : index
    %166 = memref.load %arg1[%c28] : memref<48xf32, #tpu.memory_space<smem>>
    %167 = vector.broadcast %166 : f32 to vector<42x54xf32>
    %168 = arith.mulf %9, %167 : vector<42x54xf32>
    %169 = arith.addf %165, %168 : vector<42x54xf32>
    %c34 = arith.constant 34 : index
    %170 = memref.load %arg1[%c34] : memref<48xf32, #tpu.memory_space<smem>>
    %171 = vector.broadcast %170 : f32 to vector<42x54xf32>
    %172 = arith.mulf %11, %171 : vector<42x54xf32>
    %173 = arith.addf %169, %172 : vector<42x54xf32>
    %c40 = arith.constant 40 : index
    %174 = memref.load %arg1[%c40] : memref<48xf32, #tpu.memory_space<smem>>
    %175 = vector.broadcast %174 : f32 to vector<42x54xf32>
    %176 = arith.mulf %13, %175 : vector<42x54xf32>
    %177 = arith.addf %173, %176 : vector<42x54xf32>
    %c46 = arith.constant 46 : index
    %178 = memref.load %arg1[%c46] : memref<48xf32, #tpu.memory_space<smem>>
    %179 = vector.broadcast %178 : f32 to vector<42x54xf32>
    %180 = arith.mulf %15, %179 : vector<42x54xf32>
    %181 = arith.addf %177, %180 : vector<42x54xf32>
    %182 = vector.extract_strided_slice %181 {offsets = [0, 4], sizes = [42, 49], strides = [1, 1]} : vector<42x54xf32> to vector<42x49xf32>
    %183 = arith.addf %84, %182 : vector<42x49xf32>
    %c5_33 = arith.constant 5 : index
    %184 = memref.load %arg1[%c5_33] : memref<48xf32, #tpu.memory_space<smem>>
    %185 = vector.broadcast %184 : f32 to vector<42x54xf32>
    %186 = arith.mulf %1, %185 : vector<42x54xf32>
    %c11 = arith.constant 11 : index
    %187 = memref.load %arg1[%c11] : memref<48xf32, #tpu.memory_space<smem>>
    %188 = vector.broadcast %187 : f32 to vector<42x54xf32>
    %189 = arith.mulf %3, %188 : vector<42x54xf32>
    %190 = arith.addf %186, %189 : vector<42x54xf32>
    %c17 = arith.constant 17 : index
    %191 = memref.load %arg1[%c17] : memref<48xf32, #tpu.memory_space<smem>>
    %192 = vector.broadcast %191 : f32 to vector<42x54xf32>
    %193 = arith.mulf %5, %192 : vector<42x54xf32>
    %194 = arith.addf %190, %193 : vector<42x54xf32>
    %c23 = arith.constant 23 : index
    %195 = memref.load %arg1[%c23] : memref<48xf32, #tpu.memory_space<smem>>
    %196 = vector.broadcast %195 : f32 to vector<42x54xf32>
    %197 = arith.mulf %7, %196 : vector<42x54xf32>
    %198 = arith.addf %194, %197 : vector<42x54xf32>
    %c29 = arith.constant 29 : index
    %199 = memref.load %arg1[%c29] : memref<48xf32, #tpu.memory_space<smem>>
    %200 = vector.broadcast %199 : f32 to vector<42x54xf32>
    %201 = arith.mulf %9, %200 : vector<42x54xf32>
    %202 = arith.addf %198, %201 : vector<42x54xf32>
    %c35 = arith.constant 35 : index
    %203 = memref.load %arg1[%c35] : memref<48xf32, #tpu.memory_space<smem>>
    %204 = vector.broadcast %203 : f32 to vector<42x54xf32>
    %205 = arith.mulf %11, %204 : vector<42x54xf32>
    %206 = arith.addf %202, %205 : vector<42x54xf32>
    %c41 = arith.constant 41 : index
    %207 = memref.load %arg1[%c41] : memref<48xf32, #tpu.memory_space<smem>>
    %208 = vector.broadcast %207 : f32 to vector<42x54xf32>
    %209 = arith.mulf %13, %208 : vector<42x54xf32>
    %210 = arith.addf %206, %209 : vector<42x54xf32>
    %c47 = arith.constant 47 : index
    %211 = memref.load %arg1[%c47] : memref<48xf32, #tpu.memory_space<smem>>
    %212 = vector.broadcast %211 : f32 to vector<42x54xf32>
    %213 = arith.mulf %15, %212 : vector<42x54xf32>
    %214 = arith.addf %210, %213 : vector<42x54xf32>
    %215 = vector.extract_strided_slice %214 {offsets = [0, 5], sizes = [42, 49], strides = [1, 1]} : vector<42x54xf32> to vector<42x49xf32>
    %216 = arith.addf %117, %215 : vector<42x49xf32>
    %217 = arith.addf %150, %183 : vector<42x49xf32>
    %218 = arith.addf %217, %216 : vector<42x49xf32>
    %219 = math.tanh %218 : vector<42x49xf32>
    %c0_34 = arith.constant 0 : index
    %c0_35 = arith.constant 0 : index
    %220 = vector.load %arg2[%c0_34, %c0_35] : memref<49x9xf32, #tpu.memory_space<vmem>>, vector<49x9xf32>
    %cst_36 = arith.constant dense<0.000000e+00> : vector<42x9xf32>
    %221 = tpu.matmul %219, %220, %cst_36 {dimension_numbers = #tpu.dot_dimension_numbers<[1], [0], [0], [1], [0, 0, 1, 1], [], []>} : vector<42x49xf32>, vector<49x9xf32>, vector<42x9xf32> -> vector<42x9xf32>
    %222 = math.tanh %221 : vector<42x9xf32>
    %c0_37 = arith.constant 0 : index
    %c0_38 = arith.constant 0 : index
    %223 = vector.load %arg3[%c0_37, %c0_38] : memref<42x9xf32, #tpu.memory_space<vmem>>, vector<42x9xf32>
    tpu.vector_store %arg3[%c0_37, %c0_38], %222 {strides = array<i32>} : memref<42x9xf32, #tpu.memory_space<vmem>>, vector<42x9xf32>,
    return
  }
}

</mosaic_0001>

<llo_original>
// kernel: model_tanh_forward.1
$region0: #{model_tanh_forward.1}
  #allocation0 [shape = 'u32[]', space=smem, size = 0x4, offset = 0x4, fixed_abs, tag = 'smem constant byte address 0x4 - core index']
  #allocation1 [shape = 'u32[144,128]{1,0:T(1,128)}', space=vmem, size = 0x12000, scoped, tag = 'internal scratch']
  %s0 = inlined_call_operand.vmem [shape: f32[1,8,42,54], index: 0, kind: input, shape index: {}]
  %s1 = inlined_call_operand.vmem [shape: f32[48], index: 1, kind: input, shape index: {}]
  %s2 = inlined_call_operand.vmem [shape: f32[49,9], index: 2, kind: input, shape index: {}]
  %s3 = inlined_call_operand.vmem [shape: f32[42,9], index: 3, kind: output, shape index: {}]
  %s4 = sld [smem:[#allocation0]]
  $region26: #{model_tanh_forward.1} parent=0
    _
  %s6 = ssub.s32 1, %s4
  %s7 = scalar_select 0, %s6, %s4
  $region1: #{model_tanh_forward.1} parent=0
    #allocation2 [shape = 'u8[512]{0}', space=smem, size = 0x200, scoped, tag = 'input window, operand 1, single buffered']
    #allocation3 [shape = 's32[1]{0}', space=sflag, size = 0x4, scoped, tag = 'scoped memory for model_tanh_forward.1']
    %8 = vsyncpa [#allocation3], 0
    // Predicated region
    $region2: #{model_tanh_forward.1} parent=1 // pred_check
      _
    $region3: #{model_tanh_forward.1} parent=1 // pred_check_branch
      %10 = sbr.rel (0) target = $region5
    $region4: #{model_tanh_forward.1} parent=1 // pred_region
      _
    $region5: #{model_tanh_forward.1} parent=1 // pred_fallthru
      _
    // Predicated region
    $region6: #{model_tanh_forward.1} parent=1 // pred_check
      _
    $region7: #{model_tanh_forward.1} parent=1 // pred_check_branch
      %12 = sbr.rel (0) target = $region9
    $region8: #{model_tanh_forward.1} parent=1 // pred_region
      %s14 = ssub.s32 16, 16
      %15 = vsyncadd [#allocation3], %s14
      %s17 = sshll.u32 %s1, 4
      %s18 = int_to_ptr.vmem [resolvable:$true] %s17
      %20 = dma.vmem_to_smem %s18, 16, [#allocation2], [#allocation3]
    $region9: #{model_tanh_forward.1} parent=1 // pred_fallthru
      _
    // Predicated region
    $region10: #{model_tanh_forward.1} parent=1 // pred_check
      _
    $region11: #{model_tanh_forward.1} parent=1 // pred_check_branch
      %22 = sbr.rel (0) target = $region13
    $region12: #{model_tanh_forward.1} parent=1 // pred_region
      _
    $region13: #{model_tanh_forward.1} parent=1 // pred_fallthru
      _
    // Predicated region
    $region14: #{model_tanh_forward.1} parent=1 // pred_check
      _
    $region15: #{model_tanh_forward.1} parent=1 // pred_check_branch
      %24 = sbr.rel (0) target = $region17
    $region16: #{model_tanh_forward.1} parent=1 // pred_region
      %25 = dma.done [#allocation3], 16
    $region17: #{model_tanh_forward.1} parent=1 // pred_fallthru
      _
    %26 = sfence
    %v27 = vld [vmem:[%s0] sm:$0xff]
    %v28 = vld [vmem:[%s0 + $0x8] sm:$0xff]
    %v29 = vld [vmem:[%s0 + $0x10] sm:$0xff]
    %v30 = vld [vmem:[%s0 + $0x18] sm:$0xff]
    %v31 = vld [vmem:[%s0 + $0x20] sm:$0xff]
    %v32 = vld [vmem:[%s0 + $0x28] sm:$0x3]
    %s33 = scalar_lea.vmem %s0, 48
    %v34 = vld [vmem:[%s33] sm:$0xff]
    %v35 = vld [vmem:[%s33 + $0x8] sm:$0xff]
    %v36 = vld [vmem:[%s33 + $0x10] sm:$0xff]
    %v37 = vld [vmem:[%s33 + $0x18] sm:$0xff]
    %v38 = vld [vmem:[%s33 + $0x20] sm:$0xff]
    %v39 = vld [vmem:[%s33 + $0x28] sm:$0x3]
    %s40 = scalar_lea.vmem %s0, 96
    %v41 = vld [vmem:[%s40] sm:$0xff]
    %v42 = vld [vmem:[%s40 + $0x8] sm:$0xff]
    %v43 = vld [vmem:[%s40 + $0x10] sm:$0xff]
    %v44 = vld [vmem:[%s40 + $0x18] sm:$0xff]
    %v45 = vld [vmem:[%s40 + $0x20] sm:$0xff]
    %v46 = vld [vmem:[%s40 + $0x28] sm:$0x3]
    %s47 = scalar_lea.vmem %s0, 144
    %v48 = vld [vmem:[%s47] sm:$0xff]
    %v49 = vld [vmem:[%s47 + $0x8] sm:$0xff]
    %v50 = vld [vmem:[%s47 + $0x10] sm:$0xff]
    %v51 = vld [vmem:[%s47 + $0x18] sm:$0xff]
    %v52 = vld [vmem:[%s47 + $0x20] sm:$0xff]
    %v53 = vld [vmem:[%s47 + $0x28] sm:$0x3]
    %s54 = scalar_lea.vmem %s0, 192
    %v55 = vld [vmem:[%s54] sm:$0xff]
    %v56 = vld [vmem:[%s54 + $0x8] sm:$0xff]
    %v57 = vld [vmem:[%s54 + $0x10] sm:$0xff]
    %v58 = vld [vmem:[%s54 + $0x18] sm:$0xff]
    %v59 = vld [vmem:[%s54 + $0x20] sm:$0xff]
    %v60 = vld [vmem:[%s54 + $0x28] sm:$0x3]
    %s61 = scalar_lea.vmem %s0, 240
    %v62 = vld [vmem:[%s61] sm:$0xff]
    %v63 = vld [vmem:[%s61 + $0x8] sm:$0xff]
    %v64 = vld [vmem:[%s61 + $0x10] sm:$0xff]
    %v65 = vld [vmem:[%s61 + $0x18] sm:$0xff]
    %v66 = vld [vmem:[%s61 + $0x20] sm:$0xff]
    %v67 = vld [vmem:[%s61 + $0x28] sm:$0x3]
    %s68 = scalar_lea.vmem %s0, 288
    %v69 = vld [vmem:[%s68] sm:$0xff]
    %v70 = vld [vmem:[%s68 + $0x8] sm:$0xff]
    %v71 = vld [vmem:[%s68 + $0x10] sm:$0xff]
    %v72 = vld [vmem:[%s68 + $0x18] sm:$0xff]
    %v73 = vld [vmem:[%s68 + $0x20] sm:$0xff]
    %v74 = vld [vmem:[%s68 + $0x28] sm:$0x3]
    %s75 = scalar_lea.vmem %s0, 336
    %v76 = vld [vmem:[%s75] sm:$0xff]
    %v77 = vld [vmem:[%s75 + $0x8] sm:$0xff]
    %v78 = vld [vmem:[%s75 + $0x10] sm:$0xff]
    %v79 = vld [vmem:[%s75 + $0x18] sm:$0xff]
    %v80 = vld [vmem:[%s75 + $0x20] sm:$0xff]
    %v81 = vld [vmem:[%s75 + $0x28] sm:$0x3]
    %s82 = sld [smem:[#allocation2]]
    %v83 = vstv %s82
    %v84 = vmul.f32 %v27, %v83
    %v85 = vmul.f32 %v28, %v83
    %v86 = vmul.f32 %v29, %v83
    %v87 = vmul.f32 %v30, %v83
    %v88 = vmul.f32 %v31, %v83
    %v89 = vmul.f32 %v32, %v83
    %s90 = sld [smem:[#allocation2 + $0x6]]
    %v91 = vstv %s90
    %v92 = vmul.f32 %v34, %v91
    %v93 = vmul.f32 %v35, %v91
    %v94 = vmul.f32 %v36, %v91
    %v95 = vmul.f32 %v37, %v91
    %v96 = vmul.f32 %v38, %v91
    %v97 = vmul.f32 %v39, %v91
    %v98 = vadd.f32 %v84, %v92
    %v99 = vadd.f32 %v85, %v93
    %v100 = vadd.f32 %v86, %v94
    %v101 = vadd.f32 %v87, %v95
    %v102 = vadd.f32 %v88, %v96
    %v103 = vadd.f32 %v89, %v97
    %s104 = sld [smem:[#allocation2 + $0xc]]
    %v105 = vstv %s104
    %v106 = vmul.f32 %v41, %v105
    %v107 = vmul.f32 %v42, %v105
    %v108 = vmul.f32 %v43, %v105
    %v109 = vmul.f32 %v44, %v105
    %v110 = vmul.f32 %v45, %v105
    %v111 = vmul.f32 %v46, %v105
    %v112 = vadd.f32 %v98, %v106
    %v113 = vadd.f32 %v99, %v107
    %v114 = vadd.f32 %v100, %v108
    %v115 = vadd.f32 %v101, %v109
    %v116 = vadd.f32 %v102, %v110
    %v117 = vadd.f32 %v103, %v111
    %s118 = sld [smem:[#allocation2 + $0x12]]
    %v119 = vstv %s118
    %v120 = vmul.f32 %v48, %v119
    %v121 = vmul.f32 %v49, %v119
    %v122 = vmul.f32 %v50, %v119
    %v123 = vmul.f32 %v51, %v119
    %v124 = vmul.f32 %v52, %v119
    %v125 = vmul.f32 %v53, %v119
    %v126 = vadd.f32 %v112, %v120
    %v127 = vadd.f32 %v113, %v121
    %v128 = vadd.f32 %v114, %v122
    %v129 = vadd.f32 %v115, %v123
    %v130 = vadd.f32 %v116, %v124
    %v131 = vadd.f32 %v117, %v125
    %s132 = sld [smem:[#allocation2 + $0x18]]
    %v133 = vstv %s132
    %v134 = vmul.f32 %v55, %v133
    %v135 = vmul.f32 %v56, %v133
    %v136 = vmul.f32 %v57, %v133
    %v137 = vmul.f32 %v58, %v133
    %v138 = vmul.f32 %v59, %v133
    %v139 = vmul.f32 %v60, %v133
    %v140 = vadd.f32 %v126, %v134
    %v141 = vadd.f32 %v127, %v135
    %v142 = vadd.f32 %v128, %v136
    %v143 = vadd.f32 %v129, %v137
    %v144 = vadd.f32 %v130, %v138
    %v145 = vadd.f32 %v131, %v139
    %s146 = sld [smem:[#allocation2 + $0x1e]]
    %v147 = vstv %s146
    %v148 = vmul.f32 %v62, %v147
    %v149 = vmul.f32 %v63, %v147
    %v150 = vmul.f32 %v64, %v147
    %v151 = vmul.f32 %v65, %v147
    %v152 = vmul.f32 %v66, %v147
    %v153 = vmul.f32 %v67, %v147
    %v154 = vadd.f32 %v140, %v148
    %v155 = vadd.f32 %v141, %v149
    %v156 = vadd.f32 %v142, %v150
    %v157 = vadd.f32 %v143, %v151
    %v158 = vadd.f32 %v144, %v152
    %v159 = vadd.f32 %v145, %v153
    %s160 = sld [smem:[#allocation2 + $0x24]]
    %v161 = vstv %s160
    %v162 = vmul.f32 %v69, %v161
    %v163 = vmul.f32 %v70, %v161
    %v164 = vmul.f32 %v71, %v161
    %v165 = vmul.f32 %v72, %v161
    %v166 = vmul.f32 %v73, %v161
    %v167 = vmul.f32 %v74, %v161
    %v168 = vadd.f32 %v154, %v162
    %v169 = vadd.f32 %v155, %v163
    %v170 = vadd.f32 %v156, %v164
    %v171 = vadd.f32 %v157, %v165
    %v172 = vadd.f32 %v158, %v166
    %v173 = vadd.f32 %v159, %v167
    %s174 = sld [smem:[#allocation2 + $0x2a]]
    %v175 = vstv %s174
    %v176 = vmul.f32 %v76, %v175
    %v177 = vmul.f32 %v77, %v175
    %v178 = vmul.f32 %v78, %v175
    %v179 = vmul.f32 %v79, %v175
    %v180 = vmul.f32 %v80, %v175
    %v181 = vmul.f32 %v81, %v175
    %v182 = vadd.f32 %v168, %v176
    %v183 = vadd.f32 %v169, %v177
    %v184 = vadd.f32 %v170, %v178
    %v185 = vadd.f32 %v171, %v179
    %v186 = vadd.f32 %v172, %v180
    %v187 = vadd.f32 %v173, %v181
    %v188 = vadd.f32 %v182, 0.0
    %v189 = vadd.f32 %v183, 0.0
    %v190 = vadd.f32 %v184, 0.0
    %v191 = vadd.f32 %v185, 0.0
    %v192 = vadd.f32 %v186, 0.0
    %v193 = vadd.f32 %v187, 0.0
    %s194 = sld [smem:[#allocation2 + $0x1]]
    %v195 = vstv %s194
    %v196 = vmul.f32 %v27, %v195
    %v197 = vmul.f32 %v28, %v195
    %v198 = vmul.f32 %v29, %v195
    %v199 = vmul.f32 %v30, %v195
    %v200 = vmul.f32 %v31, %v195
    %v201 = vmul.f32 %v32, %v195
    %s202 = sld [smem:[#allocation2 + $0x7]]
    %v203 = vstv %s202
    %v204 = vmul.f32 %v34, %v203
    %v205 = vmul.f32 %v35, %v203
    %v206 = vmul.f32 %v36, %v203
    %v207 = vmul.f32 %v37, %v203
    %v208 = vmul.f32 %v38, %v203
    %v209 = vmul.f32 %v39, %v203
    %v210 = vadd.f32 %v196, %v204
    %v211 = vadd.f32 %v197, %v205
    %v212 = vadd.f32 %v198, %v206
    %v213 = vadd.f32 %v199, %v207
    %v214 = vadd.f32 %v200, %v208
    %v215 = vadd.f32 %v201, %v209
    %s216 = sld [smem:[#allocation2 + $0xd]]
    %v217 = vstv %s216
    %v218 = vmul.f32 %v41, %v217
    %v219 = vmul.f32 %v42, %v217
    %v220 = vmul.f32 %v43, %v217
    %v221 = vmul.f32 %v44, %v217
    %v222 = vmul.f32 %v45, %v217
    %v223 = vmul.f32 %v46, %v217
    %v224 = vadd.f32 %v210, %v218
    %v225 = vadd.f32 %v211, %v219
    %v226 = vadd.f32 %v212, %v220
    %v227 = vadd.f32 %v213, %v221
    %v228 = vadd.f32 %v214, %v222
    %v229 = vadd.f32 %v215, %v223
    %s230 = sld [smem:[#allocation2 + $0x13]]
    %v231 = vstv %s230
    %v232 = vmul.f32 %v48, %v231
    %v233 = vmul.f32 %v49, %v231
    %v234 = vmul.f32 %v50, %v231
    %v235 = vmul.f32 %v51, %v231
    %v236 = vmul.f32 %v52, %v231
    %v237 = vmul.f32 %v53, %v231
    %v238 = vadd.f32 %v224, %v232
    %v239 = vadd.f32 %v225, %v233
    %v240 = vadd.f32 %v226, %v234
    %v241 = vadd.f32 %v227, %v235
    %v242 = vadd.f32 %v228, %v236
    %v243 = vadd.f32 %v229, %v237
    %s244 = sld [smem:[#allocation2 + $0x19]]
    %v245 = vstv %s244
    %v246 = vmul.f32 %v55, %v245
    %v247 = vmul.f32 %v56, %v245
    %v248 = vmul.f32 %v57, %v245
    %v249 = vmul.f32 %v58, %v245
    %v250 = vmul.f32 %v59, %v245
    %v251 = vmul.f32 %v60, %v245
    %v252 = vadd.f32 %v238, %v246
    %v253 = vadd.f32 %v239, %v247
    %v254 = vadd.f32 %v240, %v248
    %v255 = vadd.f32 %v241, %v249
    %v256 = vadd.f32 %v242, %v250
    %v257 = vadd.f32 %v243, %v251
    %s258 = sld [smem:[#allocation2 + $0x1f]]
    %v259 = vstv %s258
    %v260 = vmul.f32 %v62, %v259
    %v261 = vmul.f32 %v63, %v259
    %v262 = vmul.f32 %v64, %v259
    %v263 = vmul.f32 %v65, %v259
    %v264 = vmul.f32 %v66, %v259
    %v265 = vmul.f32 %v67, %v259
    %v266 = vadd.f32 %v252, %v260
    %v267 = vadd.f32 %v253, %v261
    %v268 = vadd.f32 %v254, %v262
    %v269 = vadd.f32 %v255, %v263
    %v270 = vadd.f32 %v256, %v264
    %v271 = vadd.f32 %v257, %v265
    %s272 = sld [smem:[#allocation2 + $0x25]]
    %v273 = vstv %s272
    %v274 = vmul.f32 %v69, %v273
    %v275 = vmul.f32 %v70, %v273
    %v276 = vmul.f32 %v71, %v273
    %v277 = vmul.f32 %v72, %v273
    %v278 = vmul.f32 %v73, %v273
    %v279 = vmul.f32 %v74, %v273
    %v280 = vadd.f32 %v266, %v274
    %v281 = vadd.f32 %v267, %v275
    %v282 = vadd.f32 %v268, %v276
    %v283 = vadd.f32 %v269, %v277
    %v284 = vadd.f32 %v270, %v278
    %v285 = vadd.f32 %v271, %v279
    %s286 = sld [smem:[#allocation2 + $0x2b]]
    %v287 = vstv %s286
    %v288 = vmul.f32 %v76, %v287
    %v289 = vmul.f32 %v77, %v287
    %v290 = vmul.f32 %v78, %v287
    %v291 = vmul.f32 %v79, %v287
    %v292 = vmul.f32 %v80, %v287
    %v293 = vmul.f32 %v81, %v287
    %v294 = vadd.f32 %v280, %v288
    %v295 = vadd.f32 %v281, %v289
    %v296 = vadd.f32 %v282, %v290
    %v297 = vadd.f32 %v283, %v291
    %v298 = vadd.f32 %v284, %v292
    %v299 = vadd.f32 %v285, %v293
    %v300 = vadd.f32 %v294, 0.0
    %v301 = vadd.f32 %v295, 0.0
    %v302 = vadd.f32 %v296, 0.0
    %v303 = vadd.f32 %v297, 0.0
    %v304 = vadd.f32 %v298, 0.0
    %v305 = vadd.f32 %v299, 0.0
    %s306 = sld [smem:[#allocation2 + $0x2]]
    %v307 = vstv %s306
    %v308 = vmul.f32 %v27, %v307
    %v309 = vmul.f32 %v28, %v307
    %v310 = vmul.f32 %v29, %v307
    %v311 = vmul.f32 %v30, %v307
    %v312 = vmul.f32 %v31, %v307
    %v313 = vmul.f32 %v32, %v307
    %s314 = sld [smem:[#allocation2 + $0x8]]
    %v315 = vstv %s314
    %v316 = vmul.f32 %v34, %v315
    %v317 = vmul.f32 %v35, %v315
    %v318 = vmul.f32 %v36, %v315
    %v319 = vmul.f32 %v37, %v315
    %v320 = vmul.f32 %v38, %v315
    %v321 = vmul.f32 %v39, %v315
    %v322 = vadd.f32 %v308, %v316
    %v323 = vadd.f32 %v309, %v317
    %v324 = vadd.f32 %v310, %v318
    %v325 = vadd.f32 %v311, %v319
    %v326 = vadd.f32 %v312, %v320
    %v327 = vadd.f32 %v313, %v321
    %s328 = sld [smem:[#allocation2 + $0xe]]
    %v329 = vstv %s328
    %v330 = vmul.f32 %v41, %v329
    %v331 = vmul.f32 %v42, %v329
    %v332 = vmul.f32 %v43, %v329
    %v333 = vmul.f32 %v44, %v329
    %v334 = vmul.f32 %v45, %v329
    %v335 = vmul.f32 %v46, %v329
    %v336 = vadd.f32 %v322, %v330
    %v337 = vadd.f32 %v323, %v331
    %v338 = vadd.f32 %v324, %v332
    %v339 = vadd.f32 %v325, %v333
    %v340 = vadd.f32 %v326, %v334
    %v341 = vadd.f32 %v327, %v335
    %s342 = sld [smem:[#allocation2 + $0x14]]
    %v343 = vstv %s342
    %v344 = vmul.f32 %v48, %v343
    %v345 = vmul.f32 %v49, %v343
    %v346 = vmul.f32 %v50, %v343
    %v347 = vmul.f32 %v51, %v343
    %v348 = vmul.f32 %v52, %v343
    %v349 = vmul.f32 %v53, %v343
    %v350 = vadd.f32 %v336, %v344
    %v351 = vadd.f32 %v337, %v345
    %v352 = vadd.f32 %v338, %v346
    %v353 = vadd.f32 %v339, %v347
    %v354 = vadd.f32 %v340, %v348
    %v355 = vadd.f32 %v341, %v349
    %s356 = sld [smem:[#allocation2 + $0x1a]]
    %v357 = vstv %s356
    %v358 = vmul.f32 %v55, %v357
    %v359 = vmul.f32 %v56, %v357
    %v360 = vmul.f32 %v57, %v357
    %v361 = vmul.f32 %v58, %v357
    %v362 = vmul.f32 %v59, %v357
    %v363 = vmul.f32 %v60, %v357
    %v364 = vadd.f32 %v350, %v358
    %v365 = vadd.f32 %v351, %v359
    %v366 = vadd.f32 %v352, %v360
    %v367 = vadd.f32 %v353, %v361
    %v368 = vadd.f32 %v354, %v362
    %v369 = vadd.f32 %v355, %v363
    %s370 = sld [smem:[#allocation2 + $0x20]]
    %v371 = vstv %s370
    %v372 = vmul.f32 %v62, %v371
    %v373 = vmul.f32 %v63, %v371
    %v374 = vmul.f32 %v64, %v371
    %v375 = vmul.f32 %v65, %v371
    %v376 = vmul.f32 %v66, %v371
    %v377 = vmul.f32 %v67, %v371
    %v378 = vadd.f32 %v364, %v372
    %v379 = vadd.f32 %v365, %v373
    %v380 = vadd.f32 %v366, %v374
    %v381 = vadd.f32 %v367, %v375
    %v382 = vadd.f32 %v368, %v376
    %v383 = vadd.f32 %v369, %v377
    %s384 = sld [smem:[#allocation2 + $0x26]]
    %v385 = vstv %s384
    %v386 = vmul.f32 %v69, %v385
    %v387 = vmul.f32 %v70, %v385
    %v388 = vmul.f32 %v71, %v385
    %v389 = vmul.f32 %v72, %v385
    %v390 = vmul.f32 %v73, %v385
    %v391 = vmul.f32 %v74, %v385
    %v392 = vadd.f32 %v378, %v386
    %v393 = vadd.f32 %v379, %v387
    %v394 = vadd.f32 %v380, %v388
    %v395 = vadd.f32 %v381, %v389
    %v396 = vadd.f32 %v382, %v390
    %v397 = vadd.f32 %v383, %v391
    %s398 = sld [smem:[#allocation2 + $0x2c]]
    %v399 = vstv %s398
    %v400 = vmul.f32 %v76, %v399
    %v401 = vmul.f32 %v77, %v399
    %v402 = vmul.f32 %v78, %v399
    %v403 = vmul.f32 %v79, %v399
    %v404 = vmul.f32 %v80, %v399
    %v405 = vmul.f32 %v81, %v399
    %v406 = vadd.f32 %v392, %v400
    %v407 = vadd.f32 %v393, %v401
    %v408 = vadd.f32 %v394, %v402
    %v409 = vadd.f32 %v395, %v403
    %v410 = vadd.f32 %v396, %v404
    %v411 = vadd.f32 %v397, %v405
    %v412 = vadd.f32 %v406, 0.0
    %v413 = vadd.f32 %v407, 0.0
    %v414 = vadd.f32 %v408, 0.0
    %v415 = vadd.f32 %v409, 0.0
    %v416 = vadd.f32 %v410, 0.0
    %v417 = vadd.f32 %v411, 0.0
    %s418 = sld [smem:[#allocation2 + $0x3]]
    %v419 = vstv %s418
    %v420 = vmul.f32 %v27, %v419
    %v421 = vmul.f32 %v28, %v419
    %v422 = vmul.f32 %v29, %v419
    %v423 = vmul.f32 %v30, %v419
    %v424 = vmul.f32 %v31, %v419
    %v425 = vmul.f32 %v32, %v419
    %s426 = sld [smem:[#allocation2 + $0x9]]
    %v427 = vstv %s426
    %v428 = vmul.f32 %v34, %v427
    %v429 = vmul.f32 %v35, %v427
    %v430 = vmul.f32 %v36, %v427
    %v431 = vmul.f32 %v37, %v427
    %v432 = vmul.f32 %v38, %v427
    %v433 = vmul.f32 %v39, %v427
    %v434 = vadd.f32 %v420, %v428
    %v435 = vadd.f32 %v421, %v429
    %v436 = vadd.f32 %v422, %v430
    %v437 = vadd.f32 %v423, %v431
    %v438 = vadd.f32 %v424, %v432
    %v439 = vadd.f32 %v425, %v433
    %s440 = sld [smem:[#allocation2 + $0xf]]
    %v441 = vstv %s440
    %v442 = vmul.f32 %v41, %v441
    %v443 = vmul.f32 %v42, %v441
    %v444 = vmul.f32 %v43, %v441
    %v445 = vmul.f32 %v44, %v441
    %v446 = vmul.f32 %v45, %v441
    %v447 = vmul.f32 %v46, %v441
    %v448 = vadd.f32 %v434, %v442
    %v449 = vadd.f32 %v435, %v443
    %v450 = vadd.f32 %v436, %v444
    %v451 = vadd.f32 %v437, %v445
    %v452 = vadd.f32 %v438, %v446
    %v453 = vadd.f32 %v439, %v447
    %s454 = sld [smem:[#allocation2 + $0x15]]
    %v455 = vstv %s454
    %v456 = vmul.f32 %v48, %v455
    %v457 = vmul.f32 %v49, %v455
    %v458 = vmul.f32 %v50, %v455
    %v459 = vmul.f32 %v51, %v455
    %v460 = vmul.f32 %v52, %v455
    %v461 = vmul.f32 %v53, %v455
    %v462 = vadd.f32 %v448, %v456
    %v463 = vadd.f32 %v449, %v457
    %v464 = vadd.f32 %v450, %v458
    %v465 = vadd.f32 %v451, %v459
    %v466 = vadd.f32 %v452, %v460
    %v467 = vadd.f32 %v453, %v461
    %s468 = sld [smem:[#allocation2 + $0x1b]]
    %v469 = vstv %s468
    %v470 = vmul.f32 %v55, %v469
    %v471 = vmul.f32 %v56, %v469
    %v472 = vmul.f32 %v57, %v469
    %v473 = vmul.f32 %v58, %v469
    %v474 = vmul.f32 %v59, %v469
    %v475 = vmul.f32 %v60, %v469
    %v476 = vadd.f32 %v462, %v470
    %v477 = vadd.f32 %v463, %v471
    %v478 = vadd.f32 %v464, %v472
    %v479 = vadd.f32 %v465, %v473
    %v480 = vadd.f32 %v466, %v474
    %v481 = vadd.f32 %v467, %v475
    %s482 = sld [smem:[#allocation2 + $0x21]]
    %v483 = vstv %s482
    %v484 = vmul.f32 %v62, %v483
    %v485 = vmul.f32 %v63, %v483
    %v486 = vmul.f32 %v64, %v483
    %v487 = vmul.f32 %v65, %v483
    %v488 = vmul.f32 %v66, %v483
    %v489 = vmul.f32 %v67, %v483
    %v490 = vadd.f32 %v476, %v484
    %v491 = vadd.f32 %v477, %v485
    %v492 = vadd.f32 %v478, %v486
    %v493 = vadd.f32 %v479, %v487
    %v494 = vadd.f32 %v480, %v488
    %v495 = vadd.f32 %v481, %v489
    %s496 = sld [smem:[#allocation2 + $0x27]]
    %v497 = vstv %s496
    %v498 = vmul.f32 %v69, %v497
    %v499 = vmul.f32 %v70, %v497
    %v500 = vmul.f32 %v71, %v497
    %v501 = vmul.f32 %v72, %v497
    %v502 = vmul.f32 %v73, %v497
    %v503 = vmul.f32 %v74, %v497
    %v504 = vadd.f32 %v490, %v498
    %v505 = vadd.f32 %v491, %v499
    %v506 = vadd.f32 %v492, %v500
    %v507 = vadd.f32 %v493, %v501
    %v508 = vadd.f32 %v494, %v502
    %v509 = vadd.f32 %v495, %v503
    %s510 = sld [smem:[#allocation2 + $0x2d]]
    %v511 = vstv %s510
    %v512 = vmul.f32 %v76, %v511
    %v513 = vmul.f32 %v77, %v511
    %v514 = vmul.f32 %v78, %v511
    %v515 = vmul.f32 %v79, %v511
    %v516 = vmul.f32 %v80, %v511
    %v517 = vmul.f32 %v81, %v511
    %v518 = vadd.f32 %v504, %v512
    %v519 = vadd.f32 %v505, %v513
    %v520 = vadd.f32 %v506, %v514
    %v521 = vadd.f32 %v507, %v515
    %v522 = vadd.f32 %v508, %v516
    %v523 = vadd.f32 %v509, %v517
    %530 = vrot.lane.b32.xlu0 %v518, 125
    %v531 = vpop.permute.xlu0 %530
    %532 = vrot.lane.b32.xlu0 %v519, 125
    %v533 = vpop.permute.xlu0 %532
    %534 = vrot.lane.b32.xlu0 %v520, 125
    %v535 = vpop.permute.xlu0 %534
    %536 = vrot.lane.b32.xlu0 %v521, 125
    %v537 = vpop.permute.xlu0 %536
    %538 = vrot.lane.b32.xlu0 %v522, 125
    %v539 = vpop.permute.xlu0 %538
    %540 = vrot.lane.b32.xlu0 %v523, 125
    %v541 = vpop.permute.xlu0 %540
    %v548 = vadd.f32 %v188, %v531
    %v549 = vadd.f32 %v189, %v533
    %v550 = vadd.f32 %v190, %v535
    %v551 = vadd.f32 %v191, %v537
    %v552 = vadd.f32 %v192, %v539
    %v553 = vadd.f32 %v193, %v541
    %s554 = sld [smem:[#allocation2 + $0x4]]
    %v555 = vstv %s554
    %v556 = vmul.f32 %v27, %v555
    %v557 = vmul.f32 %v28, %v555
    %v558 = vmul.f32 %v29, %v555
    %v559 = vmul.f32 %v30, %v555
    %v560 = vmul.f32 %v31, %v555
    %v561 = vmul.f32 %v32, %v555
    %s562 = sld [smem:[#allocation2 + $0xa]]
    %v563 = vstv %s562
    %v564 = vmul.f32 %v34, %v563
    %v565 = vmul.f32 %v35, %v563
    %v566 = vmul.f32 %v36, %v563
    %v567 = vmul.f32 %v37, %v563
    %v568 = vmul.f32 %v38, %v563
    %v569 = vmul.f32 %v39, %v563
    %v570 = vadd.f32 %v556, %v564
    %v571 = vadd.f32 %v557, %v565
    %v572 = vadd.f32 %v558, %v566
    %v573 = vadd.f32 %v559, %v567
    %v574 = vadd.f32 %v560, %v568
    %v575 = vadd.f32 %v561, %v569
    %s576 = sld [smem:[#allocation2 + $0x10]]
    %v577 = vstv %s576
    %v578 = vmul.f32 %v41, %v577
    %v579 = vmul.f32 %v42, %v577
    %v580 = vmul.f32 %v43, %v577
    %v581 = vmul.f32 %v44, %v577
    %v582 = vmul.f32 %v45, %v577
    %v583 = vmul.f32 %v46, %v577
    %v584 = vadd.f32 %v570, %v578
    %v585 = vadd.f32 %v571, %v579
    %v586 = vadd.f32 %v572, %v580
    %v587 = vadd.f32 %v573, %v581
    %v588 = vadd.f32 %v574, %v582
    %v589 = vadd.f32 %v575, %v583
    %s590 = sld [smem:[#allocation2 + $0x16]]
    %v591 = vstv %s590
    %v592 = vmul.f32 %v48, %v591
    %v593 = vmul.f32 %v49, %v591
    %v594 = vmul.f32 %v50, %v591
    %v595 = vmul.f32 %v51, %v591
    %v596 = vmul.f32 %v52, %v591
    %v597 = vmul.f32 %v53, %v591
    %v598 = vadd.f32 %v584, %v592
    %v599 = vadd.f32 %v585, %v593
    %v600 = vadd.f32 %v586, %v594
    %v601 = vadd.f32 %v587, %v595
    %v602 = vadd.f32 %v588, %v596
    %v603 = vadd.f32 %v589, %v597
    %s604 = sld [smem:[#allocation2 + $0x1c]]
    %v605 = vstv %s604
    %v606 = vmul.f32 %v55, %v605
    %v607 = vmul.f32 %v56, %v605
    %v608 = vmul.f32 %v57, %v605
    %v609 = vmul.f32 %v58, %v605
    %v610 = vmul.f32 %v59, %v605
    %v611 = vmul.f32 %v60, %v605
    %v612 = vadd.f32 %v598, %v606
    %v613 = vadd.f32 %v599, %v607
    %v614 = vadd.f32 %v600, %v608
    %v615 = vadd.f32 %v601, %v609
    %v616 = vadd.f32 %v602, %v610
    %v617 = vadd.f32 %v603, %v611
    %s618 = sld [smem:[#allocation2 + $0x22]]
    %v619 = vstv %s618
    %v620 = vmul.f32 %v62, %v619
    %v621 = vmul.f32 %v63, %v619
    %v622 = vmul.f32 %v64, %v619
    %v623 = vmul.f32 %v65, %v619
    %v624 = vmul.f32 %v66, %v619
    %v625 = vmul.f32 %v67, %v619
    %v626 = vadd.f32 %v612, %v620
    %v627 = vadd.f32 %v613, %v621
    %v628 = vadd.f32 %v614, %v622
    %v629 = vadd.f32 %v615, %v623
    %v630 = vadd.f32 %v616, %v624
    %v631 = vadd.f32 %v617, %v625
    %s632 = sld [smem:[#allocation2 + $0x28]]
    %v633 = vstv %s632
    %v634 = vmul.f32 %v69, %v633
    %v635 = vmul.f32 %v70, %v633
    %v636 = vmul.f32 %v71, %v633
    %v637 = vmul.f32 %v72, %v633
    %v638 = vmul.f32 %v73, %v633
    %v639 = vmul.f32 %v74, %v633
    %v640 = vadd.f32 %v626, %v634
    %v641 = vadd.f32 %v627, %v635
    %v642 = vadd.f32 %v628, %v636
    %v643 = vadd.f32 %v629, %v637
    %v644 = vadd.f32 %v630, %v638
    %v645 = vadd.f32 %v631, %v639
    %s646 = sld [smem:[#allocation2 + $0x2e]]
    %v647 = vstv %s646
    %v648 = vmul.f32 %v76, %v647
    %v649 = vmul.f32 %v77, %v647
    %v650 = vmul.f32 %v78, %v647
    %v651 = vmul.f32 %v79, %v647
    %v652 = vmul.f32 %v80, %v647
    %v653 = vmul.f32 %v81, %v647
    %v654 = vadd.f32 %v640, %v648
    %v655 = vadd.f32 %v641, %v649
    %v656 = vadd.f32 %v642, %v650
    %v657 = vadd.f32 %v643, %v651
    %v658 = vadd.f32 %v644, %v652
    %v659 = vadd.f32 %v645, %v653
    %666 = vrot.lane.b32.xlu0 %v654, 125
    %v667 = vpop.permute.xlu0 %666
    %668 = vrot.lane.b32.xlu0 %v655, 125
    %v669 = vpop.permute.xlu0 %668
    %670 = vrot.lane.b32.xlu0 %v656, 125
    %v671 = vpop.permute.xlu0 %670
    %672 = vrot.lane.b32.xlu0 %v657, 125
    %v673 = vpop.permute.xlu0 %672
    %674 = vrot.lane.b32.xlu0 %v658, 125
    %v675 = vpop.permute.xlu0 %674
    %676 = vrot.lane.b32.xlu0 %v659, 125
    %v677 = vpop.permute.xlu0 %676
    %v684 = vadd.f32 %v300, %v667
    %v685 = vadd.f32 %v301, %v669
    %v686 = vadd.f32 %v302, %v671
    %v687 = vadd.f32 %v303, %v673
    %v688 = vadd.f32 %v304, %v675
    %v689 = vadd.f32 %v305, %v677
    %s690 = sld [smem:[#allocation2 + $0x5]]
    %v691 = vstv %s690
    %v692 = vmul.f32 %v27, %v691
    %v693 = vmul.f32 %v28, %v691
    %v694 = vmul.f32 %v29, %v691
    %v695 = vmul.f32 %v30, %v691
    %v696 = vmul.f32 %v31, %v691
    %v697 = vmul.f32 %v32, %v691
    %s698 = sld [smem:[#allocation2 + $0xb]]
    %v699 = vstv %s698
    %v700 = vmul.f32 %v34, %v699
    %v701 = vmul.f32 %v35, %v699
    %v702 = vmul.f32 %v36, %v699
    %v703 = vmul.f32 %v37, %v699
    %v704 = vmul.f32 %v38, %v699
    %v705 = vmul.f32 %v39, %v699
    %v706 = vadd.f32 %v692, %v700
    %v707 = vadd.f32 %v693, %v701
    %v708 = vadd.f32 %v694, %v702
    %v709 = vadd.f32 %v695, %v703
    %v710 = vadd.f32 %v696, %v704
    %v711 = vadd.f32 %v697, %v705
    %s712 = sld [smem:[#allocation2 + $0x11]]
    %v713 = vstv %s712
    %v714 = vmul.f32 %v41, %v713
    %v715 = vmul.f32 %v42, %v713
    %v716 = vmul.f32 %v43, %v713
    %v717 = vmul.f32 %v44, %v713
    %v718 = vmul.f32 %v45, %v713
    %v719 = vmul.f32 %v46, %v713
    %v720 = vadd.f32 %v706, %v714
    %v721 = vadd.f32 %v707, %v715
    %v722 = vadd.f32 %v708, %v716
    %v723 = vadd.f32 %v709, %v717
    %v724 = vadd.f32 %v710, %v718
    %v725 = vadd.f32 %v711, %v719
    %s726 = sld [smem:[#allocation2 + $0x17]]
    %v727 = vstv %s726
    %v728 = vmul.f32 %v48, %v727
    %v729 = vmul.f32 %v49, %v727
    %v730 = vmul.f32 %v50, %v727
    %v731 = vmul.f32 %v51, %v727
    %v732 = vmul.f32 %v52, %v727
    %v733 = vmul.f32 %v53, %v727
    %v734 = vadd.f32 %v720, %v728
    %v735 = vadd.f32 %v721, %v729
    %v736 = vadd.f32 %v722, %v730
    %v737 = vadd.f32 %v723, %v731
    %v738 = vadd.f32 %v724, %v732
    %v739 = vadd.f32 %v725, %v733
    %s740 = sld [smem:[#allocation2 + $0x1d]]
    %v741 = vstv %s740
    %v742 = vmul.f32 %v55, %v741
    %v743 = vmul.f32 %v56, %v741
    %v744 = vmul.f32 %v57, %v741
    %v745 = vmul.f32 %v58, %v741
    %v746 = vmul.f32 %v59, %v741
    %v747 = vmul.f32 %v60, %v741
    %v748 = vadd.f32 %v734, %v742
    %v749 = vadd.f32 %v735, %v743
    %v750 = vadd.f32 %v736, %v744
    %v751 = vadd.f32 %v737, %v745
    %v752 = vadd.f32 %v738, %v746
    %v753 = vadd.f32 %v739, %v747
    %s754 = sld [smem:[#allocation2 + $0x23]]
    %v755 = vstv %s754
    %v756 = vmul.f32 %v62, %v755
    %v757 = vmul.f32 %v63, %v755
    %v758 = vmul.f32 %v64, %v755
    %v759 = vmul.f32 %v65, %v755
    %v760 = vmul.f32 %v66, %v755
    %v761 = vmul.f32 %v67, %v755
    %v762 = vadd.f32 %v748, %v756
    %v763 = vadd.f32 %v749, %v757
    %v764 = vadd.f32 %v750, %v758
    %v765 = vadd.f32 %v751, %v759
    %v766 = vadd.f32 %v752, %v760
    %v767 = vadd.f32 %v753, %v761
    %s768 = sld [smem:[#allocation2 + $0x29]]
    %v769 = vstv %s768
    %v770 = vmul.f32 %v69, %v769
    %v771 = vmul.f32 %v70, %v769
    %v772 = vmul.f32 %v71, %v769
    %v773 = vmul.f32 %v72, %v769
    %v774 = vmul.f32 %v73, %v769
    %v775 = vmul.f32 %v74, %v769
    %v776 = vadd.f32 %v762, %v770
    %v777 = vadd.f32 %v763, %v771
    %v778 = vadd.f32 %v764, %v772
    %v779 = vadd.f32 %v765, %v773
    %v780 = vadd.f32 %v766, %v774
    %v781 = vadd.f32 %v767, %v775
    %s782 = sld [smem:[#allocation2 + $0x2f]]
    %v783 = vstv %s782
    %v784 = vmul.f32 %v76, %v783
    %v785 = vmul.f32 %v77, %v783
    %v786 = vmul.f32 %v78, %v783
    %v787 = vmul.f32 %v79, %v783
    %v788 = vmul.f32 %v80, %v783
    %v789 = vmul.f32 %v81, %v783
    %v790 = vadd.f32 %v776, %v784
    %v791 = vadd.f32 %v777, %v785
    %v792 = vadd.f32 %v778, %v786
    %v793 = vadd.f32 %v779, %v787
    %v794 = vadd.f32 %v780, %v788
    %v795 = vadd.f32 %v781, %v789
    %802 = vrot.lane.b32.xlu0 %v790, 125
    %v803 = vpop.permute.xlu0 %802
    %804 = vrot.lane.b32.xlu0 %v791, 125
    %v805 = vpop.permute.xlu0 %804
    %806 = vrot.lane.b32.xlu0 %v792, 125
    %v807 = vpop.permute.xlu0 %806
    %808 = vrot.lane.b32.xlu0 %v793, 125
    %v809 = vpop.permute.xlu0 %808
    %810 = vrot.lane.b32.xlu0 %v794, 125
    %v811 = vpop.permute.xlu0 %810
    %812 = vrot.lane.b32.xlu0 %v795, 125
    %v813 = vpop.permute.xlu0 %812
    %v820 = vadd.f32 %v412, %v803
    %v821 = vadd.f32 %v413, %v805
    %v822 = vadd.f32 %v414, %v807
    %v823 = vadd.f32 %v415, %v809
    %v824 = vadd.f32 %v416, %v811
    %v825 = vadd.f32 %v417, %v813
    %832 = vrot.lane.b32.xlu0 %v684, 127
    %v833 = vpop.permute.xlu0 %832
    %834 = vrot.lane.b32.xlu0 %v685, 127
    %v835 = vpop.permute.xlu0 %834
    %836 = vrot.lane.b32.xlu0 %v686, 127
    %v837 = vpop.permute.xlu0 %836
    %838 = vrot.lane.b32.xlu0 %v687, 127
    %v839 = vpop.permute.xlu0 %838
    %840 = vrot.lane.b32.xlu0 %v688, 127
    %v841 = vpop.permute.xlu0 %840
    %842 = vrot.lane.b32.xlu0 %v689, 127
    %v843 = vpop.permute.xlu0 %842
    %v850 = vadd.f32 %v548, %v833
    %v851 = vadd.f32 %v549, %v835
    %v852 = vadd.f32 %v550, %v837
    %v853 = vadd.f32 %v551, %v839
    %v854 = vadd.f32 %v552, %v841
    %v855 = vadd.f32 %v553, %v843
    %862 = vrot.lane.b32.xlu0 %v820, 126
    %v863 = vpop.permute.xlu0 %862
    %864 = vrot.lane.b32.xlu0 %v821, 126
    %v865 = vpop.permute.xlu0 %864
    %866 = vrot.lane.b32.xlu0 %v822, 126
    %v867 = vpop.permute.xlu0 %866
    %868 = vrot.lane.b32.xlu0 %v823, 126
    %v869 = vpop.permute.xlu0 %868
    %870 = vrot.lane.b32.xlu0 %v824, 126
    %v871 = vpop.permute.xlu0 %870
    %872 = vrot.lane.b32.xlu0 %v825, 126
    %v873 = vpop.permute.xlu0 %872
    %v880 = vadd.f32 %v850, %v863
    %v881 = vadd.f32 %v851, %v865
    %v882 = vadd.f32 %v852, %v867
    %v883 = vadd.f32 %v853, %v869
    %v884 = vadd.f32 %v854, %v871
    %v885 = vadd.f32 %v855, %v873
    %v886 = vtanh.pop %v880
    %v887 = vtanh.pop %v881
    %v888 = vtanh.pop %v882
    %v889 = vtanh.pop %v883
    %v890 = vtanh.pop %v884
    %v891 = vtanh.pop %v885
    %v892 = vld [vmem:[%s2] sm:$0xff]
    %v893 = vld [vmem:[%s2 + $0x8] sm:$0xff]
    %v894 = vld [vmem:[%s2 + $0x10] sm:$0xff]
    %v895 = vld [vmem:[%s2 + $0x18] sm:$0xff]
    %v896 = vld [vmem:[%s2 + $0x20] sm:$0xff]
    %v897 = vld [vmem:[%s2 + $0x28] sm:$0xff]
    %v898 = vld [vmem:[%s2 + $0x30] sm:$0x1]
    %vm899 = vcmask 400384
    %v901 = vsel %vm899, %v886, 0
    %v904 = vsel %vm899, %v887, 0
    %v907 = vsel %vm899, %v888, 0
    %v910 = vsel %vm899, %v889, 0
    %v913 = vsel %vm899, %v890, 0
    %v916 = vsel %vm899, %v891, 0
    %vm918 = vcmask 1040384
    %v920 = vsel %vm918, %v898, 0
    %922 = vmatprep.subr.mxu0 0.0
    %923 = vmatpush1.msra.mxu0 0.0
    %924 = vmatprep.subr.mxu0 0.0
    %925 = vmatpush1.msra.mxu0 0.0
    %926 = vmatprep.subr.mxu0 0.0
    %927 = vmatpush1.msra.mxu0 0.0
    %928 = vmatprep.subr.mxu0 0.0
    %929 = vmatpush1.msra.mxu0 0.0
    %930 = vmatprep.subr.mxu0 0.0
    %931 = vmatpush1.msra.mxu0 0.0
    %932 = vmatprep.subr.mxu0 0.0
    %933 = vmatpush1.msra.mxu0 0.0
    %934 = vmatprep.subr.mxu0 0.0
    %935 = vmatpush1.msra.mxu0 0.0
    %936 = vmatprep.subr.mxu0 0.0
    %937 = vmatpush1.msra.mxu0 0.0
    %938 = vmatprep.subr.mxu0 0.0
    %939 = vmatpush1.msra.mxu0 0.0
    %940 = vmatprep.subr.mxu0 0.0
    %941 = vmatpush1.msra.mxu0 %v920
    %942 = vmatprep.subr.mxu0 0.0
    %943 = vmatpush1.msra.mxu0 %v897
    %944 = vmatprep.subr.mxu0 0.0
    %945 = vmatpush1.msra.mxu0 %v896
    %946 = vmatprep.subr.mxu0 0.0
    %947 = vmatpush1.msra.mxu0 %v895
    %948 = vmatprep.subr.mxu0 0.0
    %949 = vmatpush1.msra.mxu0 %v894
    %950 = vmatprep.subr.mxu0 0.0
    %951 = vmatpush1.msra.mxu0 %v893
    %952 = vmatprep.subr.mxu0 0.0
    %953 = vmatpush1.msra.mxu0 %v892
    %954 = vmatprep.subr.mxu0 0.0
    %955 = vmatpush2.msra.mxu0 0.0
    %956 = vmatprep.subr.mxu0 0.0
    %957 = vmatpush2.msra.mxu0 0.0
    %958 = vmatprep.subr.mxu0 0.0
    %959 = vmatpush2.msra.mxu0 0.0
    %960 = vmatprep.subr.mxu0 0.0
    %961 = vmatpush2.msra.mxu0 0.0
    %962 = vmatprep.subr.mxu0 0.0
    %963 = vmatpush2.msra.mxu0 0.0
    %964 = vmatprep.subr.mxu0 0.0
    %965 = vmatpush2.msra.mxu0 0.0
    %966 = vmatprep.subr.mxu0 0.0
    %967 = vmatpush2.msra.mxu0 0.0
    %968 = vmatprep.subr.mxu0 0.0
    %969 = vmatpush2.msra.mxu0 0.0
    %970 = vmatprep.subr.mxu0 0.0
    %971 = vmatpush2.msra.mxu0 0.0
    %972 = vmatprep.subr.mxu0 0.0
    %973 = vmatpush2.msra.mxu0 0.0
    %974 = vmatprep.subr.mxu0 0.0
    %975 = vmatpush2.msra.mxu0 0.0
    %976 = vmatprep.subr.mxu0 0.0
    %977 = vmatpush2.msra.mxu0 0.0
    %978 = vmatprep.subr.mxu0 0.0
    %979 = vmatpush2.msra.mxu0 0.0
    %980 = vmatprep.subr.mxu0 0.0
    %981 = vmatpush2.msra.mxu0 0.0
    %982 = vmatprep.subr.mxu0 0.0
    %983 = vmatpush2.msra.mxu0 0.0
    %984 = vmatprep.subr.mxu0 0.0
    %985 = vmatpush2.msra.mxu0 0.0
    %986 = vmatprep.mubr.f32.mxu0 0.0
    %987 = vmatmul.mubr.f32.gmra.mxu0 %v901
    %v988 = vpop.f32.mrf.mxu0
    %v989 = vadd.f32 0.0, %v988
    %v990 = vpop.f32.mrf.mxu0
    %991 = vmatprep.mubr.f32.mxu0 0.0
    %992 = vmatmul.mubr.f32.gmra.mxu0 %v904
    %v993 = vpop.f32.mrf.mxu0
    %v994 = vadd.f32 0.0, %v993
    %v995 = vpop.f32.mrf.mxu0
    %996 = vmatprep.mubr.f32.mxu0 0.0
    %997 = vmatmul.mubr.f32.gmra.mxu0 %v907
    %v998 = vpop.f32.mrf.mxu0
    %v999 = vadd.f32 0.0, %v998
    %v1000 = vpop.f32.mrf.mxu0
    %1001 = vmatprep.mubr.f32.mxu0 0.0
    %1002 = vmatmul.mubr.f32.gmra.mxu0 %v910
    %v1003 = vpop.f32.mrf.mxu0
    %v1004 = vadd.f32 0.0, %v1003
    %v1005 = vpop.f32.mrf.mxu0
    %1006 = vmatprep.mubr.f32.mxu0 0.0
    %1007 = vmatmul.mubr.f32.gmra.mxu0 %v913
    %v1008 = vpop.f32.mrf.mxu0
    %v1009 = vadd.f32 0.0, %v1008
    %v1010 = vpop.f32.mrf.mxu0
    %1011 = vmatprep.mubr.f32.mxu0 0.0
    %1012 = vmatmul.mubr.f32.gmra.mxu0 %v916
    %v1013 = vpop.f32.mrf.mxu0
    %v1014 = vadd.f32 0.0, %v1013
    %v1015 = vpop.f32.mrf.mxu0
    %1016 = vdwg.mxu0
    %v1017 = vtanh.pop %v989
    %v1018 = vtanh.pop %v994
    %v1019 = vtanh.pop %v999
    %v1020 = vtanh.pop %v1004
    %v1021 = vtanh.pop %v1009
    %v1022 = vtanh.pop %v1014
    %vm1023 = vcmask 72704
    %1024 = vst.msk [vmem:[%s3] sm:$0xff] %vm1023, %v1017
    %1025 = vst.msk [vmem:[%s3 + $0x8] sm:$0xff] %vm1023, %v1018
    %1026 = vst.msk [vmem:[%s3 + $0x10] sm:$0xff] %vm1023, %v1019
    %1027 = vst.msk [vmem:[%s3 + $0x18] sm:$0xff] %vm1023, %v1020
    %1028 = vst.msk [vmem:[%s3 + $0x20] sm:$0xff] %vm1023, %v1021
    %vm1029 = vcmask 66560
    %1030 = vst.msk [vmem:[%s3 + $0x28] sm:$0x3] %vm1029, %v1022
    // Predicated region
    $region18: #{model_tanh_forward.1} parent=1 // pred_check
      _
    $region19: #{model_tanh_forward.1} parent=1 // pred_check_branch
      %1032 = sbr.rel (0) target = $region21
    $region20: #{model_tanh_forward.1} parent=1 // pred_region
      _
    $region21: #{model_tanh_forward.1} parent=1 // pred_fallthru
      _
    // Predicated region
    $region22: #{model_tanh_forward.1} parent=1 // pred_check
      _
    $region23: #{model_tanh_forward.1} parent=1 // pred_check_branch
      %1034 = sbr.rel (0) target = $region25
    $region24: #{model_tanh_forward.1} parent=1 // pred_region
      _
    $region25: #{model_tanh_forward.1} parent=1 // pred_fallthru
      _
    %1035 = vsyncpa [#allocation3], 1

</llo_original>
